<compile_context>
chip_gen: v6e
topology: v6e:2x2x1
jax: 0.10.0
libtpu: 0.0.40
codegen_flags: <defaults>
</compile_context>

<pallas_src>
import functools

import jax
import jax.numpy as jnp
from jax import lax
from jax.experimental import pallas as pl
from jax.experimental.pallas import tpu as pltpu

_LANES = 128
_SMALL_INPUT_THRESHOLD = 64 * 1024  # elements; below this, plain JAX wins.


def _round_up(x, m):
    return ((x + m - 1) // m) * m


def _round_down(x, m):
    return (x // m) * m


def _device_defaults():
    """(num_splits, target block bytes) tuned per TPU generation."""
    splits, block_bytes = 1, 2 * 1024 * 1024          # v5e / v6e: 1 TC, 2 MiB blocks
    try:
        kind = jax.devices()[0].device_kind.lower()
    except Exception:  # pragma: no cover - defensive
        kind = ""
    if "v7" in kind or "7x" in kind:
        splits, block_bytes = 2, 4 * 1024 * 1024      # v7x: 2 TCs, bigger tiles
    return splits, block_bytes


def _sumsq_kernel(pred_ref, gt_ref, out_ref, *, rows, tile_rows,
                  tiles_per_split, needs_mask):
    """Accumulate per-lane sums of (pred-gt)^2 along the reduction grid axis.

    pred_ref / gt_ref : (tile_rows, JC) blocks in VMEM (full last dim).
    out_ref           : (1, 1, JC) f32 lane-dense block, resident across the
                        reduction axis (index_map ignores it); acts as a
                        vreg-width accumulator (no SMEM scalar RMW chain).
    """
    c = pl.program_id(0)
    i = pl.program_id(1)

    @pl.when(i == 0)
    def _init():
        out_ref[...] = jnp.zeros_like(out_ref)

    # Cast once to f32 before subtract/square: v5e has no bf16 VALU path and
    # f32 accumulation is the right call for a loss on every generation.
    diff = pred_ref[...].astype(jnp.float32) - gt_ref[...].astype(jnp.float32)

    if needs_mask:
        # Mask ragged tail rows / fully-phantom (clamped) blocks BEFORE
        # squaring so garbage (possibly NaN/Inf) in the OOB region of the
        # block cannot poison the sum.
        row0 = (c * tiles_per_split + i) * tile_rows
        row_ids = lax.broadcasted_iota(jnp.int32, diff.shape, 0) + row0
        diff = jnp.where(row_ids < rows, diff, 0.0)

    # Fold the tile over its rows: VALU vreg adds + one sublane reduce, all
    # per-step (hidden under DMA).  The only loop-carried dep is one vreg add.
    out_ref[0] = out_ref[0] + jnp.sum(diff * diff, axis=0, keepdims=True)


def pose3d_loss(pose_3d_pred, pose_3d_gt, *, tile_rows=None, num_splits=None,
                force_pallas=False):
    assert pose_3d_pred.shape == pose_3d_gt.shape and pose_3d_pred.ndim == 3
    B, J, C = pose_3d_pred.shape
    n = B * J * C
    inv_norm = jnp.float32(1.0 / (C * B))  # sum(mean(.,axis=2))/B == sum(.)/(C*B)

    if not force_pallas and n <= _SMALL_INPUT_THRESHOLD:
        # A pallas_call has fixed launch + DMA setup cost; for tiny tensors let
        # XLA fuse the trivial expression instead.
        diff = pose_3d_pred.astype(jnp.float32) - pose_3d_gt.astype(jnp.float32)
        return jnp.sum(diff * diff) * inv_norm

    default_splits, target_block_bytes = _device_defaults()
    splits = default_splits if num_splits is None else max(1, int(num_splits))

    # ---- free, contiguous reshape: (B, J, C) -> (B, J*C), no HBM traffic ----
    JC = J * C
    pred2d = jnp.reshape(pose_3d_pred, (B, JC))
    gt2d = jnp.reshape(pose_3d_gt, (B, JC))

    itemsize = pred2d.dtype.itemsize
    # Size the tile off the lane-PADDED row width (VMEM pads the last dim to a
    # multiple of 128 lanes), so the VMEM footprint matches the budget.
    padded_row_bytes = _round_up(JC, _LANES) * itemsize
    if tile_rows is None:
        tb = max(8, _round_down(target_block_bytes // padded_row_bytes, 8))
    else:
        tb = max(1, int(tile_rows))
    if tb >= B:
        tb = B                                # block dim == full array dim: legal
    else:
        tb = max(8, _round_down(tb, 8))       # sublane-aligned tile rows

    total_tiles = -(-B // tb)
    splits = max(1, min(splits, total_tiles))
    tiles_per_split = -(-total_tiles // splits)
    needs_mask = (total_tiles * tb != B) or (tiles_per_split * splits != total_tiles)

    def in_map(c, i):
        blk = c * tiles_per_split + i
        # Clamp phantom trailing blocks onto a real block; their contribution
        # is fully masked out inside the kernel (unclamped index is used for
        # the mask), so nothing is double counted.
        return (jnp.minimum(blk, total_tiles - 1), 0)

    kernel = functools.partial(
        _sumsq_kernel, rows=B, tile_rows=tb,
        tiles_per_split=tiles_per_split, needs_mask=needs_mask)

    block_vmem = tb * _round_up(JC, _LANES) * itemsize
    # 2 inputs x 2 pipeline buffers + headroom; well below physical VMEM on
    # every generation for the default tile sizes.
    vmem_limit = int(min(4 * block_vmem + (8 << 20), 48 << 20))

    partials = pl.pallas_call(
        kernel,
        out_shape=jax.ShapeDtypeStruct((splits, 1, JC), jnp.float32),
        grid=(splits, tiles_per_split),
        in_specs=[
            pl.BlockSpec((tb, JC), in_map),
            pl.BlockSpec((tb, JC), in_map),
        ],
        out_specs=pl.BlockSpec((1, 1, JC), lambda c, i: (c, 0, 0)),
        compiler_params=pltpu.CompilerParams(
            dimension_semantics=("parallel", "arbitrary"),
            vmem_limit_bytes=vmem_limit),
    )(pred2d, gt2d)

    # Cross-lane / cross-split reduction once, outside the hot loop.
    return jnp.sum(partials) * inv_norm


if __name__ == "__main__":
    key = jax.random.PRNGKey(0)
    keys = jax.random.split(key, 6)

    def reference(pred, gt):
        # Mirrors the PyTorch forward exactly.
        diff = pred.astype(jnp.float32) - gt.astype(jnp.float32)
        return jnp.sum(jnp.mean(diff * diff, axis=2)) / pred.shape[0]

    # Case 1: tiny shape matching the module convention (batch, joints, 3),
    # forced through the Pallas kernel (single full-array block).
    B, J, C = 2, 8, 3
    pred_s = jax.random.normal(keys[0], (B, J, C), dtype=jnp.float32)
    gt_s = jax.random.normal(keys[1], (B, J, C), dtype=jnp.float32)
    loss_s = jax.block_until_ready(pose3d_loss(pred_s, gt_s, force_pallas=True))
    ref_s = reference(pred_s, gt_s)
    assert jnp.allclose(loss_s, ref_s, rtol=1e-5, atol=1e-6), (loss_s, ref_s)

    # Auto-dispatch path for tiny inputs (plain JAX, no pallas_call).
    loss_auto = jax.block_until_ready(pose3d_loss(pred_s, gt_s))
    assert jnp.allclose(loss_auto, ref_s, rtol=1e-5, atol=1e-6), (loss_auto, ref_s)

    # Case 2: multi-step resident accumulation with a 2-way split, no tail mask.
    B2, J2, C2 = 64, 24, 3
    pred_m = jax.random.normal(keys[2], (B2, J2, C2), dtype=jnp.float32)
    gt_m = jax.random.normal(keys[3], (B2, J2, C2), dtype=jnp.float32)
    loss_m = jax.block_until_ready(
        pose3d_loss(pred_m, gt_m, force_pallas=True, tile_rows=8, num_splits=2))
    ref_m = reference(pred_m, gt_m)
    assert jnp.allclose(loss_m, ref_m, rtol=1e-5, atol=1e-5), (loss_m, ref_m)

    # Case 3: ragged rows (B not a multiple of the tile) plus a phantom block
    # from the 2-way split -> exercises the clamp + in-kernel mask path.
    B3, J3, C3 = 40, 17, 3
    pred_r = jax.random.normal(keys[4], (B3, J3, C3), dtype=jnp.float32)
    gt_r = jax.random.normal(keys[5], (B3, J3, C3), dtype=jnp.float32)
    loss_r = jax.block_until_ready(
        pose3d_loss(pred_r, gt_r, force_pallas=True, tile_rows=16, num_splits=2))
    ref_r = reference(pred_r, gt_r)
    assert jnp.allclose(loss_r, ref_r, rtol=1e-5, atol=1e-5), (loss_r, ref_r)

    # Case 4: bf16 inputs streamed as bf16 (half the HBM traffic), f32 accumulate.
    pred_b = pred_m.astype(jnp.bfloat16)
    gt_b = gt_m.astype(jnp.bfloat16)
    loss_b = jax.block_until_ready(
        pose3d_loss(pred_b, gt_b, force_pallas=True, tile_rows=16))
    ref_b = reference(pred_b, gt_b)
    assert jnp.allclose(loss_b, ref_b, rtol=1e-4, atol=1e-4), (loss_b, ref_b)

    print("KERNEL_OK")
</pallas_src>

<mosaic_0001>
module attributes {stable_mosaic.version = 11 : i64} {
  func.func @_sumsq_kernel(%arg0: i32, %arg1: i32, %arg2: memref<2x24xf32, #tpu.memory_space<vmem>>, %arg3: memref<2x24xf32, #tpu.memory_space<vmem>>, %arg4: memref<1x1x24xf32, #tpu.memory_space<vmem>>) attributes {dimension_semantics = [#tpu.dimension_semantics<parallel>, #tpu.dimension_semantics<arbitrary>], iteration_bounds = array<i64: 1, 1>, scalar_prefetch = 0 : i64, scratch_operands = 0 : i64, tpu.core_type = #tpu.core_type<tc>, window_params = [{transform_indices = @transform_0, window_bounds = array<i64: 2, 24>}, {transform_indices = @transform_1, window_bounds = array<i64: 2, 24>}, {transform_indices = @transform_2, window_bounds = array<i64: 1, 1, 24>}]} {
    %c0_i32 = arith.constant 0 : i32
    %0 = arith.cmpi eq, %arg1, %c0_i32 : i32
    %1 = arith.extui %0 : i1 to i32
    %c0_i32_0 = arith.constant 0 : i32
    %2 = arith.cmpi ne, %1, %c0_i32_0 : i32
    scf.if %2 {
      %cst_10 = arith.constant 0.000000e+00 : f32
      %15 = vector.broadcast %cst_10 : f32 to vector<1x1x24xf32>
      %c0_11 = arith.constant 0 : index
      %c0_12 = arith.constant 0 : index
      %c0_13 = arith.constant 0 : index
      %16 = vector.load %arg4[%c0_11, %c0_12, %c0_13] : memref<1x1x24xf32, #tpu.memory_space<vmem>>, vector<1x1x24xf32>
      tpu.vector_store %arg4[%c0_11, %c0_12, %c0_13], %15 {strides = array<i32>} : memref<1x1x24xf32, #tpu.memory_space<vmem>>, vector<1x1x24xf32>,
    } else {
    }
    %c0 = arith.constant 0 : index
    %c0_1 = arith.constant 0 : index
    %3 = vector.load %arg2[%c0, %c0_1] : memref<2x24xf32, #tpu.memory_space<vmem>>, vector<2x24xf32>
    %c0_2 = arith.constant 0 : index
    %c0_3 = arith.constant 0 : index
    %4 = vector.load %arg3[%c0_2, %c0_3] : memref<2x24xf32, #tpu.memory_space<vmem>>, vector<2x24xf32>
    %5 = arith.subf %3, %4 : vector<2x24xf32>
    %c0_4 = arith.constant 0 : index
    %c0_5 = arith.constant 0 : index
    %c0_6 = arith.constant 0 : index
    %6 = vector.load %arg4[%c0_4, %c0_5, %c0_6] : memref<1x1x24xf32, #tpu.memory_space<vmem>>, vector<1x1x24xf32>
    %7 = vector.shape_cast %6 : vector<1x1x24xf32> to vector<1x24xf32>
    %8 = arith.mulf %5, %5 : vector<2x24xf32>
    %cst = arith.constant dense<0.000000e+00> : vector<24xf32>
    %9 = vector.multi_reduction <add>, %8, %cst [0] : vector<2x24xf32> to vector<24xf32>
    %10 = vector.shape_cast %9 : vector<24xf32> to vector<1x24xf32>
    %11 = arith.addf %7, %10 : vector<1x24xf32>
    %c0_7 = arith.constant 0 : index
    %c0_8 = arith.constant 0 : index
    %c0_9 = arith.constant 0 : index
    %12 = vector.load %arg4[%c0_7, %c0_8, %c0_9] : memref<1x1x24xf32, #tpu.memory_space<vmem>>, vector<1x1x24xf32>
    %13 = vector.shape_cast %12 : vector<1x1x24xf32> to vector<1x24xf32>
    %14 = vector.shape_cast %11 : vector<1x24xf32> to vector<1x1x24xf32>
    tpu.vector_store %arg4[%c0_7, %c0_8, %c0_9], %14 {strides = array<i32>} : memref<1x1x24xf32, #tpu.memory_space<vmem>>, vector<1x1x24xf32>,
    return
  }
  func.func @transform_0(%arg0: i32, %arg1: i32) -> (i32, i32) {
    %c1_i32 = arith.constant 1 : i32
    %0 = arith.muli %arg0, %c1_i32 : i32
    %1 = arith.addi %0, %arg1 : i32
    %c0_i32 = arith.constant 0 : i32
    %2 = arith.minsi %1, %c0_i32 : i32
    %c0_i32_0 = arith.constant 0 : i32
    %c0_i32_1 = arith.constant 0 : i32
    return %2, %c0_i32_0 : i32, i32
  }
  func.func @transform_1(%arg0: i32, %arg1: i32) -> (i32, i32) {
    %c1_i32 = arith.constant 1 : i32
    %0 = arith.muli %arg0, %c1_i32 : i32
    %1 = arith.addi %0, %arg1 : i32
    %c0_i32 = arith.constant 0 : i32
    %2 = arith.minsi %1, %c0_i32 : i32
    %c0_i32_0 = arith.constant 0 : i32
    %c0_i32_1 = arith.constant 0 : i32
    return %2, %c0_i32_0 : i32, i32
  }
  func.func @transform_2(%arg0: i32, %arg1: i32) -> (i32, i32, i32) {
    %c0_i32 = arith.constant 0 : i32
    %c0_i32_0 = arith.constant 0 : i32
    %c0_i32_1 = arith.constant 0 : i32
    return %arg0, %c0_i32, %c0_i32_0 : i32, i32, i32
  }
}

</mosaic_0001>

<llo_original>
// kernel: tpu_custom_call.1
$region0: #{tpu_custom_call.1}
  #allocation0 [shape = 'u32[]', space=smem, size = 0x4, offset = 0x4, fixed_abs, tag = 'smem constant byte address 0x4 - core index']
  #allocation1 [shape = 'u32[144,128]{1,0:T(1,128)}', space=vmem, size = 0x12000, scoped, tag = 'internal scratch']
  %s0 = inlined_call_operand.hbm [shape: f32[2,24], index: 0, kind: input, shape index: {}]
  %s1 = inlined_call_operand.hbm [shape: f32[2,24], index: 1, kind: input, shape index: {}]
  %s2 = inlined_call_operand.hbm [shape: f32[1,1,24], index: 2, kind: output, shape index: {}]
  %s3 = sld [smem:[#allocation0]]
  $region30: #{tpu_custom_call.1} parent=0
    _
  %s5 = ssub.s32 1, %s3
  %s6 = scalar_select 0, %s5, %s3
  $region1: #{tpu_custom_call.1} parent=0
    #allocation2 [shape = 'u8[1024]{0}', space=vmem, size = 0x400, scoped, tag = 'input window, operand 0, single buffered']
    #allocation3 [shape = 's32[1]{0}', space=sflag, size = 0x4, scoped, tag = 'scoped memory for tpu_custom_call.1']
    #allocation4 [shape = 's32[1]{0}', space=sflag, size = 0x4, scoped, tag = 'scoped memory for tpu_custom_call.1']
    #allocation5 [shape = 'u8[1024]{0}', space=vmem, size = 0x400, scoped, tag = 'input window, operand 1, single buffered']
    #allocation6 [shape = 's32[1]{0}', space=sflag, size = 0x4, scoped, tag = 'scoped memory for tpu_custom_call.1']
    #allocation7 [shape = 'u8[512]{0}', space=vmem, size = 0x400, scoped, tag = 'output window, operand 0, single buffered']
    %7 = vsyncpa [#allocation3], 0
    %8 = vsyncpa [#allocation6], 0
    %9 = vsyncpa [#allocation4], 0
    // Predicated region
    $region2: #{tpu_custom_call.1} parent=1 // pred_check
      _
    $region3: #{tpu_custom_call.1} parent=1 // pred_check_branch
      %11 = sbr.rel (0) target = $region5
    $region4: #{tpu_custom_call.1} parent=1 // pred_region
      %s12 = sadd.s32 0, 0
      %p13 = scmp.lt.s32.totalorder %s12, 0
      %s14 = scalar_select %p13, %s12, 0
      %s16 = ssub.s32 32, 32
      %17 = vsyncadd [#allocation3], %s16
      %s18 = smul.addr %s14, 32
      %s19 = scalar_lea.hbm %s0, %s18
      %s21 = sshll.u32 [#allocation2], 4
      %s22 = int_to_ptr.vmem [resolvable:$true] %s21
      %24 = dma.hbm_to_vmem [thread:$0]  %s19, 32, %s22, [#allocation3]
    $region5: #{tpu_custom_call.1} parent=1 // pred_fallthru
      _
    // Predicated region
    $region6: #{tpu_custom_call.1} parent=1 // pred_check
      _
    $region7: #{tpu_custom_call.1} parent=1 // pred_check_branch
      %26 = sbr.rel (0) target = $region9
    $region8: #{tpu_custom_call.1} parent=1 // pred_region
      %s27 = sadd.s32 0, 0
      %p28 = scmp.lt.s32.totalorder %s27, 0
      %s29 = scalar_select %p28, %s27, 0
      %s31 = ssub.s32 32, 32
      %32 = vsyncadd [#allocation6], %s31
      %s33 = smul.addr %s29, 32
      %s34 = scalar_lea.hbm %s1, %s33
      %s36 = sshll.u32 [#allocation5], 4
      %s37 = int_to_ptr.vmem [resolvable:$true] %s36
      %39 = dma.hbm_to_vmem [thread:$0]  %s34, 32, %s37, [#allocation6]
    $region9: #{tpu_custom_call.1} parent=1 // pred_fallthru
      _
    // Predicated region
    $region10: #{tpu_custom_call.1} parent=1 // pred_check
      _
    $region11: #{tpu_custom_call.1} parent=1 // pred_check_branch
      %41 = sbr.rel (0) target = $region13
    $region12: #{tpu_custom_call.1} parent=1 // pred_region
      %42 = dma.done [#allocation3], 32
    $region13: #{tpu_custom_call.1} parent=1 // pred_fallthru
      _
    // Predicated region
    $region14: #{tpu_custom_call.1} parent=1 // pred_check
      _
    $region15: #{tpu_custom_call.1} parent=1 // pred_check_branch
      %44 = sbr.rel (0) target = $region17
    $region16: #{tpu_custom_call.1} parent=1 // pred_region
      %45 = dma.done [#allocation6], 32
    $region17: #{tpu_custom_call.1} parent=1 // pred_fallthru
      _
    %s46 = sadd.s32 0, 0
    %p47 = scmp.lt.s32.totalorder %s46, 0
    %s48 = scalar_select %p47, %s46, 0
    %s49 = sadd.s32 0, 0
    %p50 = scmp.lt.s32.totalorder %s49, 0
    %s51 = scalar_select %p50, %s49, 0
    %p52 = scmp.eq.s32.totalorder 0, 0
    // Predicated region
    $region18: #{tpu_custom_call.1} parent=1 // pred_check
      %p53 = pneg %p52
    $region19: #{tpu_custom_call.1} parent=1 // pred_check_branch
      %55 = sbr.rel (%p53) target = $region21
    $region20: #{tpu_custom_call.1} parent=1 // pred_region
      %vm56 = vcmask 188416
      %57 = vst.msk [vmem:[#allocation7] sm:$0x1] %vm56, 0.0
    $region21: #{tpu_custom_call.1} parent=1 // pred_fallthru
      _
    %v58 = vld [vmem:[#allocation2] sm:$0x3]
    %v59 = vld [vmem:[#allocation5] sm:$0x3]
    %v60 = vsub.f32 %v58, %v59
    %v61 = vld [vmem:[#allocation7] sm:$0x1]
    %v62 = vmul.f32 %v60, %v60
    %vm63 = vcmask 189440
    %v64 = vsel %vm63, %v62, 0.0
    %v65 = vrot.slane %v64, 4
    %v66 = vadd.f32 %v64, %v65
    %v67 = vrot.slane %v66, 2
    %v68 = vadd.f32 %v66, %v67
    %v69 = vrot.slane %v68, 1
    %v70 = vadd.f32 %v68, %v69
    %v71 = vadd.f32 %v61, %v70
    %vm72 = vcmask 188416
    %73 = vst.msk [vmem:[#allocation7] sm:$0x1] %vm72, %v71
    // Predicated region
    $region22: #{tpu_custom_call.1} parent=1 // pred_check
      _
    $region23: #{tpu_custom_call.1} parent=1 // pred_check_branch
      %75 = sbr.rel (0) target = $region25
    $region24: #{tpu_custom_call.1} parent=1 // pred_region
      %s77 = ssub.s32 16, 16
      %78 = vsyncadd [#allocation4], %s77
      %s80 = sshll.u32 [#allocation7], 4
      %s81 = int_to_ptr.vmem [resolvable:$true] %s80
      %83 = dma.vmem_to_hbm [thread:$0]  %s81, 16, %s2, [#allocation4]
    $region25: #{tpu_custom_call.1} parent=1 // pred_fallthru
      _
    // Predicated region
    $region26: #{tpu_custom_call.1} parent=1 // pred_check
      _
    $region27: #{tpu_custom_call.1} parent=1 // pred_check_branch
      %85 = sbr.rel (0) target = $region29
    $region28: #{tpu_custom_call.1} parent=1 // pred_region
      %86 = dma.done [#allocation4], 16
    $region29: #{tpu_custom_call.1} parent=1 // pred_fallthru
      _
    %87 = vsyncpa [#allocation3], 1
    %88 = vsyncpa [#allocation6], 1
    %89 = vsyncpa [#allocation4], 1

</llo_original>
